<compile_context>
chip_gen: v6e
topology: v6e:2x2x1
jax: 0.10.0
libtpu: 0.0.40
codegen_flags: <defaults>
</compile_context>

<pallas_src>
import jax
import jax.numpy as jnp
from jax.experimental import pallas as pl
from jax.experimental.pallas import tpu as pltpu

IGNORE_ID = -1
_NEG_INF = -1.0e30


def _round_up(x, m):
    return (x + m - 1) // m * m


# --------------------- per-generation VMEM budget / probes -------------------

_VMEM_LIMIT = None
_SINGLE_BUFFER_OK = None


def _vmem_limit_bytes():
    """Scoped-VMEM budget ~75% of physical VMEM (v5e/v6e 128MiB -> 96MiB,
    v7x 64MiB -> 48MiB)."""
    global _VMEM_LIMIT
    if _VMEM_LIMIT is None:
        try:
            cap = int(pltpu.get_tpu_info().vmem_capacity_bytes)
        except Exception:
            cap = 64 * 1024 * 1024          # conservative: v7x per-core VMEM
        _VMEM_LIMIT = int(cap * 3 // 4)
    return _VMEM_LIMIT


def _single_buffer_ok():
    """Probe once whether pipeline_mode=pl.Buffered(1) is supported so that
    constant-index weight blocks can be single-buffered (frees VMEM)."""
    global _SINGLE_BUFFER_OK
    if _SINGLE_BUFFER_OK is None:
        try:
            def _k(x_ref, o_ref):
                o_ref[...] = x_ref[...] + 1.0
            spec = pl.BlockSpec((8, 128), lambda i: (0, 0),
                                pipeline_mode=pl.Buffered(1))
            f = pl.pallas_call(
                _k, out_shape=jax.ShapeDtypeStruct((8, 128), jnp.float32),
                grid=(1,), in_specs=[spec],
                out_specs=pl.BlockSpec((8, 128), lambda i: (0, 0)))
            jax.block_until_ready(f(jnp.zeros((8, 128), jnp.float32)))
            _SINGLE_BUFFER_OK = True
        except Exception:
            _SINGLE_BUFFER_OK = False
    return _SINGLE_BUFFER_OK


def _weight_spec(block_shape, index_map):
    """BlockSpec for constant-index operands (weights/biases): single-buffered
    when supported, plain double-buffered spec otherwise."""
    if _single_buffer_ok():
        return pl.BlockSpec(block_shape, index_map,
                            pipeline_mode=pl.Buffered(1))
    return pl.BlockSpec(block_shape, index_map)


# ------------------------------ linear kernels ------------------------------

def _linear_kernel(x_ref, w_ref, b_ref, o_ref):
    y = jnp.dot(x_ref[...].astype(jnp.bfloat16), w_ref[...],
                preferred_element_type=jnp.float32) + b_ref[...]
    o_ref[...] = y.astype(o_ref.dtype)


def _linear_layernorm_kernel(x_ref, w_ref, b_ref, g_ref, beta_ref, o_ref):
    y = jnp.dot(x_ref[...].astype(jnp.bfloat16), w_ref[...],
                preferred_element_type=jnp.float32) + b_ref[...]
    mean = jnp.mean(y, axis=-1, keepdims=True)
    var = jnp.mean((y - mean) ** 2, axis=-1, keepdims=True)
    o_ref[...] = ((y - mean) * jax.lax.rsqrt(var + 1e-5) * g_ref[...]
                  + beta_ref[...]).astype(o_ref.dtype)


def _choose_m_tile(M, K, N, vmem_limit, w_buffers, max_tile=2048):
    # weight (bf16) + small vectors, then per-row: x/out blocks (x2 buffers) +
    # one f32 temp row.
    fixed = K * N * 2 * w_buffers + N * 4 * 2 * 4
    per_m = (K * 4 + N * 4) * 2 + N * 4
    budget = max(vmem_limit - (1 << 20) - fixed, per_m * 8)
    tm = min(M, max_tile, budget // per_m)
    if tm < M:
        tm = max(8, tm // 8 * 8)
    return int(tm)


def linear(x, w_t_bf16, b):
    """x: (M, K) f32, w_t_bf16: (K, N) bf16, b: (1, N) f32 -> (M, N) f32."""
    M, K = x.shape
    N = w_t_bf16.shape[1]
    vmem_limit = _vmem_limit_bytes()
    wb = 1 if _single_buffer_ok() else 2
    tm = _choose_m_tile(M, K, N, vmem_limit, wb)
    ce = pl.CostEstimate(flops=2 * M * K * N, transcendentals=0,
                         bytes_accessed=M * K * 4 + K * N * 2 + N * 4 + M * N * 4)
    return pl.pallas_call(
        _linear_kernel,
        out_shape=jax.ShapeDtypeStruct((M, N), jnp.float32),
        grid=(pl.cdiv(M, tm),),
        in_specs=[pl.BlockSpec((tm, K), lambda i: (i, 0)),
                  _weight_spec((K, N), lambda i: (0, 0)),
                  _weight_spec((1, N), lambda i: (0, 0))],
        out_specs=pl.BlockSpec((tm, N), lambda i: (i, 0)),
        compiler_params=pltpu.CompilerParams(
            dimension_semantics=("parallel",),
            vmem_limit_bytes=int(vmem_limit)),
        cost_estimate=ce,
    )(x, w_t_bf16, b)


def linear_layernorm(x, w_t_bf16, b, gamma, beta):
    """project Linear + prediction LayerNorm fused. x:(M,K) -> (M,N) f32."""
    M, K = x.shape
    N = w_t_bf16.shape[1]
    vmem_limit = _vmem_limit_bytes()
    wb = 1 if _single_buffer_ok() else 2
    tm = _choose_m_tile(M, K, N, vmem_limit, wb)
    ce = pl.CostEstimate(flops=2 * M * K * N + 6 * M * N, transcendentals=M,
                         bytes_accessed=M * K * 4 + K * N * 2 + 3 * N * 4 + M * N * 4)
    return pl.pallas_call(
        _linear_layernorm_kernel,
        out_shape=jax.ShapeDtypeStruct((M, N), jnp.float32),
        grid=(pl.cdiv(M, tm),),
        in_specs=[pl.BlockSpec((tm, K), lambda i: (i, 0)),
                  _weight_spec((K, N), lambda i: (0, 0)),
                  _weight_spec((1, N), lambda i: (0, 0)),
                  _weight_spec((1, N), lambda i: (0, 0)),
                  _weight_spec((1, N), lambda i: (0, 0))],
        out_specs=pl.BlockSpec((tm, N), lambda i: (i, 0)),
        compiler_params=pltpu.CompilerParams(
            dimension_semantics=("parallel",),
            vmem_limit_bytes=int(vmem_limit)),
        cost_estimate=ce,
    )(x, w_t_bf16, b, gamma, beta)


# --------------------------------- LSTM -------------------------------------

def _make_lstm_kernel(H):
    def kernel(gx_ref, whh_ref, y_ref, h_sc, c_sc):
        # gx_ref: (1, Bp, 4H) = X @ W_ih + (b_ih + b_hh) for one step u.
        # h/c scratch persists across the (parts, U) grid; reset at u == 0.
        @pl.when(pl.program_id(1) == 0)
        def _():
            h_sc[...] = jnp.zeros_like(h_sc)
            c_sc[...] = jnp.zeros_like(c_sc)

        gates = gx_ref[0] + jnp.dot(h_sc[...].astype(jnp.bfloat16), whh_ref[...],
                                    preferred_element_type=jnp.float32)  # (Bp,4H)
        i = jax.nn.sigmoid(gates[:, 0:H])
        f = jax.nn.sigmoid(gates[:, H:2 * H])
        g = jnp.tanh(gates[:, 2 * H:3 * H])
        o = jax.nn.sigmoid(gates[:, 3 * H:4 * H])
        c = f * c_sc[...] + i * g
        h = o * jnp.tanh(c)
        c_sc[...] = c
        h_sc[...] = h
        y_ref[0] = h
    return kernel


def lstm(gates_x_tm, w_hh_t_bf16):
    """Single-layer LSTM recurrence, streamed over U via the grid.
    gates_x_tm: (U, B, 4H) f32 -> (U, B, H) f32.  PyTorch gate order [i,f,g,o]."""
    U, B, G = gates_x_tm.shape
    H = w_hh_t_bf16.shape[0]
    # v7x: the recurrence is independent per batch row; split batch halves across
    # the two TensorCores when the halves stay sublane-aligned.
    parts = 2 if (B % 16 == 0) else 1
    Bp = B // parts
    return pl.pallas_call(
        _make_lstm_kernel(H),
        out_shape=jax.ShapeDtypeStruct((U, B, H), jnp.float32),
        grid=(parts, U),
        in_specs=[pl.BlockSpec((1, Bp, G), lambda p, u: (u, p, 0)),
                  _weight_spec((H, G), lambda p, u: (0, 0))],
        out_specs=pl.BlockSpec((1, Bp, H), lambda p, u: (u, p, 0)),
        scratch_shapes=[pltpu.VMEM((Bp, H), jnp.float32),
                        pltpu.VMEM((Bp, H), jnp.float32)],
        compiler_params=pltpu.CompilerParams(
            dimension_semantics=("parallel", "arbitrary"),
            vmem_limit_bytes=_vmem_limit_bytes()),
    )(gates_x_tm, w_hh_t_bf16)


# --------------------------------- joint -------------------------------------

def _make_joint_kernel(U, Vp, fused):
    # joint_func='add', pre_linear already applied, post_linear=False:
    #   out[t, u, :] = log_softmax(tanh(enc[t] + dec[u]) @ W_out + b_out)
    def kernel(enc_ref, dec_ref, w_ref, b_ref, o_ref):
        enc = enc_ref[0]                           # (tt, Jp) f32
        dec = dec_ref[0]                           # (U,  Jp) f32
        bias = b_ref[...]                          # (1, Vp) f32 (hoisted)
        tt = enc.shape[0]
        Jp = enc.shape[1]

        def log_softmax(logits):
            m = jnp.max(logits, axis=-1, keepdims=True)
            lse = jnp.log(jnp.sum(jnp.exp(logits - m), axis=-1, keepdims=True)) + m
            return logits - lse

        if fused:
            # One MXU matmul with M = U*tt rows.  The (U, tt, Jp) -> (U*tt, Jp)
            # collapse is layout-clean because tt % 8 == 0 and Jp % 128 == 0.
            z = jnp.tanh(dec[:, None, :] + enc[None, :, :])       # (U, tt, Jp)
            z = z.reshape(U * tt, Jp)
            logits = jnp.dot(z.astype(jnp.bfloat16), w_ref[...],
                             preferred_element_type=jnp.float32) + bias
            logp = log_softmax(logits)                            # (U*tt, Vp)
            for u in range(U):
                # dense (tt, Vp) store at a static 128-multiple lane offset.
                o_ref[0, :, u * Vp:(u + 1) * Vp] = (
                    logp[u * tt:(u + 1) * tt, :].astype(o_ref.dtype))
        else:
            # Per-u matmuls (M = tt rows) with smaller f32 temporaries; stores
            # are still dense and lane-aligned.
            for u in range(U):
                x = jnp.tanh(enc + dec[u:u + 1, :])               # (tt, Jp)
                logits = jnp.dot(x.astype(jnp.bfloat16), w_ref[...],
                                 preferred_element_type=jnp.float32) + bias
                o_ref[0, :, u * Vp:(u + 1) * Vp] = (
                    log_softmax(logits).astype(o_ref.dtype))
    return kernel


def _plan_joint_tiling(T, U, Vp, Jp, B, vmem_limit, w_buffers):
    """Pick the T-tile and fused/per-u path from a VMEM budget that counts the
    vocab weight, dec block, bias and the in-kernel f32 temporaries."""
    headroom = 2 << 20
    fixed = Jp * Vp * 2 * w_buffers + U * Jp * 4 * 2 + Vp * 4 * 2
    budget = max(vmem_limit - headroom - fixed, 0)
    # per enc-row of the tile: out block (x2) + enc block (x2) + f32 temporaries.
    per_t_fused = U * Vp * 4 * 2 + Jp * 4 * 2 + U * Jp * 4 + U * Vp * 4 * 2
    per_t_loop = U * Vp * 4 * 2 + Jp * 4 * 2 + Jp * 4 + Vp * 4 * 2

    def fit(per_t):
        tt = min(T, budget // per_t)
        if tt < T:
            tt = tt // 8 * 8                     # keep blocks sublane-aligned
        if B < 4 and T >= 16:
            # keep >= 2 grid steps on the T axis: second TensorCore / pipelining
            tt = min(tt, _round_up(pl.cdiv(T, 2), 8))
        return int(max(tt, 0))

    tt = fit(per_t_fused)
    if tt >= 8 and tt % 8 == 0:
        return tt, True
    tt = fit(per_t_loop)
    if tt >= 8:
        return tt, False
    # Does not fit even minimally; smallest legal tile, let vmem_limit surface it.
    # TODO(synk): grid-tile Vp with an online logsumexp for very large U*Vp.
    return min(T, 8), False


def joint(enc, dec, w_out_bf16, b_out):
    """enc: (B,T,Jp) f32, dec: (B,U,Jp) f32 -> (B,T,U,Vp) f32 log-probs
    (vocab padded to Vp; padded columns ~ -1e30)."""
    B, T, Jp = enc.shape
    U = dec.shape[1]
    Vp = w_out_bf16.shape[1]
    vmem_limit = _vmem_limit_bytes()
    w_buffers = 1 if _single_buffer_ok() else 2
    tt, fused = _plan_joint_tiling(T, U, Vp, Jp, B, vmem_limit, w_buffers)
    ce = pl.CostEstimate(
        flops=2 * B * T * U * Jp * Vp,
        transcendentals=B * T * U * (Jp + Vp),
        bytes_accessed=(B * T * Jp + B * U * Jp + B * T * U * Vp) * 4
        + Jp * Vp * 2 + Vp * 4)
    out = pl.pallas_call(
        _make_joint_kernel(U, Vp, fused),
        out_shape=jax.ShapeDtypeStruct((B, T, U * Vp), jnp.float32),
        grid=(B, pl.cdiv(T, tt)),
        in_specs=[pl.BlockSpec((1, tt, Jp), lambda b, t: (b, t, 0)),
                  pl.BlockSpec((1, U, Jp), lambda b, t: (b, 0, 0)),
                  _weight_spec((Jp, Vp), lambda b, t: (0, 0)),
                  _weight_spec((1, Vp), lambda b, t: (0, 0))],
        out_specs=pl.BlockSpec((1, tt, U * Vp), lambda b, t: (b, t, 0)),
        compiler_params=pltpu.CompilerParams(
            dimension_semantics=("parallel", "parallel"),
            vmem_limit_bytes=int(vmem_limit)),
        cost_estimate=ce,
    )(enc, dec, w_out_bf16, b_out)
    # free: row-major split of the last dim (no data movement).
    return out.reshape(B, T, U, Vp)


# ------------------------- parameter initialization ------------------------

def init_params(key, vocab_size, enc_size, joint_inner_dim):
    D = enc_size          # embed_dim = input_size = hidden_size = output_size
    H = D
    O = D
    J = joint_inner_dim
    V = vocab_size
    Jp = _round_up(J, 128)   # lane-align joint inner dim
    Vp = _round_up(V, 128)   # lane-align vocab (lane-dense joint stores)
    # TODO(synk): consider Jp rounded to 256 on v6e/v7x if the joint turns out
    #             MXU-bound for the target shapes (256x256 MXU).
    ks = jax.random.split(key, 10)

    def xavier_uniform(k, out_f, in_f):
        a = float(jnp.sqrt(6.0 / (in_f + out_f)))
        return jax.random.uniform(k, (out_f, in_f), minval=-a, maxval=a)

    def torch_linear(k, out_f, in_f):
        kw, kb = jax.random.split(k)
        bound = 1.0 / float(jnp.sqrt(in_f))
        w = jax.random.uniform(kw, (out_f, in_f), minval=-bound, maxval=bound)
        b = jax.random.uniform(kb, (out_f,), minval=-bound, maxval=bound)
        return w, b

    # text embedding: N(0, D^-0.5), padding row zeroed (padding_idx = -1 -> V-1)
    emb = jax.random.normal(ks[0], (V, D)) * (D ** -0.5)
    emb = emb.at[V + IGNORE_ID].set(0.0)

    # LSTM (num_blocks=1): uniform(-1/sqrt(H), 1/sqrt(H))
    bound = 1.0 / float(jnp.sqrt(H))
    w_ih = jax.random.uniform(ks[1], (4 * H, D), minval=-bound, maxval=bound)
    w_hh = jax.random.uniform(ks[2], (4 * H, H), minval=-bound, maxval=bound)
    b_ih = jax.random.uniform(ks[3], (4 * H,), minval=-bound, maxval=bound)
    b_hh = jax.random.uniform(ks[4], (4 * H,), minval=-bound, maxval=bound)

    # self.project (plain nn.Linear default init) + LayerNorm
    w_proj, b_proj = torch_linear(ks[5], O, H)
    ln_g = jnp.ones((O,), jnp.float32)
    ln_b = jnp.zeros((O,), jnp.float32)

    # JointNet: enc_ffn, prd_ffn (default init), project_layer (xavier, zero bias)
    w_enc, b_enc = torch_linear(ks[6], J, D)
    w_prd, b_prd = torch_linear(ks[7], J, D)
    w_out = xavier_uniform(ks[8], V, J)
    b_out = jnp.zeros((V,), jnp.float32)

    # Pad J -> Jp with zero weights/bias (tanh(0+0)=0 and zero w_out rows => no
    # contribution); pad V -> Vp with zero weights and a -1e30 bias so padded
    # logits vanish under log_softmax.  Numerically identical to unpadded.
    w_enc_T = jnp.zeros((D, Jp), jnp.float32).at[:, :J].set(w_enc.T)
    b_enc_p = jnp.zeros((1, Jp), jnp.float32).at[:, :J].set(b_enc[None, :])
    w_prd_T = jnp.zeros((D, Jp), jnp.float32).at[:, :J].set(w_prd.T)
    b_prd_p = jnp.zeros((1, Jp), jnp.float32).at[:, :J].set(b_prd[None, :])
    w_out_T = jnp.zeros((Jp, Vp), jnp.float32).at[:J, :V].set(w_out.T)
    b_out_p = jnp.full((1, Vp), _NEG_INF, jnp.float32).at[:, :V].set(b_out[None, :])

    params = dict(
        vocab_size=V,
        emb=emb,
        w_ih_T=w_ih.T, w_hh_T=w_hh.T, b_lstm=(b_ih + b_hh).reshape(1, -1),
        w_proj_T=w_proj.T, b_proj=b_proj.reshape(1, -1),
        ln_g=ln_g.reshape(1, -1), ln_b=ln_b.reshape(1, -1),
        w_enc_T=w_enc_T, b_enc=b_enc_p,
        w_prd_T=w_prd_T, b_prd=b_prd_p,
        w_out_T=w_out_T, b_out=b_out_p,
    )
    # Pre-cast matmul operands to bf16 once (review: no per-forward casts/HBM
    # round trips); f32 masters are kept for the pure-JAX reference.
    for name in ("w_ih_T", "w_hh_T", "w_proj_T", "w_enc_T", "w_prd_T", "w_out_T"):
        params[name + "_bf16"] = params[name].astype(jnp.bfloat16)
    return params


# ------------------------------- forward pass ------------------------------

def transducer_decoder_forward(p, memory, ys_in_pad, ys_in_lens):
    """Returns (B, T, U, Vp) log-probs.  Columns >= vocab_size are padding
    (~ -1e30 after log_softmax) and must be ignored downstream — no extra
    `[..., :V]` slicing pass over the dominant tensor is done here (review)."""
    del ys_in_lens  # unused by the PyTorch forward as well
    B, T, D = memory.shape
    U = ys_in_pad.shape[1]
    V = p["vocab_size"]
    H = p["w_hh_T"].shape[0]
    Jp = p["w_enc_T"].shape[1]

    # text embedding gathered directly in time-major (U, B, D); embed dropout /
    # layer-drop are eval-mode identities.  padding_idx = -1 maps to the zeroed
    # last row (explicit; no reliance on gather's negative-index behaviour).
    tok = jnp.where(ys_in_pad < 0, ys_in_pad + V, ys_in_pad)
    x_tm = jnp.take(p["emb"], tok.T, axis=0)                        # (U, B, D)

    # LSTM input projection hoisted out of the recurrence: one big MXU matmul.
    gates_x = linear(x_tm.reshape(U * B, D), p["w_ih_T_bf16"],
                     p["b_lstm"]).reshape(U, B, 4 * H)              # (U, B, 4H)

    # LSTM recurrence (only h @ W_hh per step), streamed over U by the grid.
    y_tm = lstm(gates_x, p["w_hh_T_bf16"])                          # (U, B, H)

    # project Linear fused with prediction LayerNorm, then prd_ffn.
    z = linear_layernorm(y_tm.reshape(U * B, H), p["w_proj_T_bf16"],
                         p["b_proj"], p["ln_g"], p["ln_b"])         # (U*B, O)
    dec = linear(z, p["w_prd_T_bf16"], p["b_prd"]).reshape(U, B, Jp)
    dec = jnp.transpose(dec, (1, 0, 2))                             # (B, U, Jp)

    enc = linear(memory.reshape(B * T, D), p["w_enc_T_bf16"],
                 p["b_enc"]).reshape(B, T, Jp)                      # (B, T, Jp)

    # joint add + tanh + vocab projection + log_softmax (fused, T-tiled).
    return joint(enc, dec, p["w_out_T_bf16"], p["b_out"])           # (B,T,U,Vp)


# ----------------------------- pure-JAX reference ---------------------------

def reference_forward(p, memory, ys_in_pad):
    V = p["vocab_size"]
    tok = jnp.where(ys_in_pad < 0, ys_in_pad + V, ys_in_pad)
    x = p["emb"][tok]
    B, U, D = x.shape
    H = p["w_hh_T"].shape[0]

    def cell(carry, x_t):
        h, c = carry
        gates = x_t @ p["w_ih_T"] + h @ p["w_hh_T"] + p["b_lstm"][0]
        i, f, g, o = jnp.split(gates, 4, axis=-1)
        i, f, o = jax.nn.sigmoid(i), jax.nn.sigmoid(f), jax.nn.sigmoid(o)
        g = jnp.tanh(g)
        c = f * c + i * g
        h = o * jnp.tanh(c)
        return (h, c), h

    h0 = jnp.zeros((B, H)); c0 = jnp.zeros((B, H))
    _, ys = jax.lax.scan(cell, (h0, c0), jnp.transpose(x, (1, 0, 2)))
    x = jnp.transpose(ys, (1, 0, 2))
    x = x @ p["w_proj_T"] + p["b_proj"][0]
    mean = x.mean(-1, keepdims=True)
    var = ((x - mean) ** 2).mean(-1, keepdims=True)
    x = (x - mean) / jnp.sqrt(var + 1e-5) * p["ln_g"][0] + p["ln_b"][0]
    enc = memory @ p["w_enc_T"] + p["b_enc"][0]
    dec = x @ p["w_prd_T"] + p["b_prd"][0]
    z = jnp.tanh(enc[:, :, None, :] + dec[:, None, :, :])
    logits = z @ p["w_out_T"] + p["b_out"][0]
    return jax.nn.log_softmax(logits, axis=-1)[..., :V]


# ----------------------------------- main -----------------------------------

if __name__ == "__main__":
    B, T, U, D, J, V = 2, 8, 6, 32, 64, 32   # small synthetic shapes
    key = jax.random.PRNGKey(0)
    kp, km, ky = jax.random.split(key, 3)

    params = init_params(kp, vocab_size=V, enc_size=D, joint_inner_dim=J)
    memory = jax.random.normal(km, (B, T, D), dtype=jnp.float32)
    ys_in_pad = jax.random.randint(ky, (B, U), 0, V - 1, dtype=jnp.int32)
    ys_in_lens = jnp.full((B,), U, dtype=jnp.int32)

    out = transducer_decoder_forward(params, memory, ys_in_pad, ys_in_lens)
    out = jax.block_until_ready(out)
    Vp = params["w_out_T"].shape[1]
    assert out.shape == (B, T, U, Vp), out.shape

    ref = reference_forward(params, memory, ys_in_pad)              # (B,T,U,V)
    max_err = float(jnp.max(jnp.abs(out[..., :V] - ref)))
    # kernels use bf16 MXU operands (f32 accumulate); reference is pure f32.
    assert max_err < 5e-2, f"mismatch vs reference, max_err={max_err}"
    if Vp > V:  # padded vocab columns must be effectively -inf
        assert float(jnp.max(out[..., V:])) < -1e20

    print("KERNEL_OK")
</pallas_src>

<mosaic_0001>
module attributes {stable_mosaic.version = 11 : i64} {
  func.func @_k(%arg0: i32, %arg1: memref<8x128xf32, #tpu.memory_space<vmem>>, %arg2: memref<8x128xf32, #tpu.memory_space<vmem>>) attributes {dimension_semantics = [#tpu.dimension_semantics<arbitrary>], iteration_bounds = array<i64: 1>, scalar_prefetch = 0 : i64, scratch_operands = 0 : i64, tpu.core_type = #tpu.core_type<tc>, window_params = [{pipeline_mode = #tpu.pipeline_mode<synchronous>, transform_indices = @transform_0, window_bounds = array<i64: 8, 128>}, {pipeline_mode = #tpu.pipeline_mode<synchronous>, transform_indices = @transform_1, window_bounds = array<i64: 8, 128>}]} {
    %c0 = arith.constant 0 : index
    %c0_0 = arith.constant 0 : index
    %0 = vector.load %arg1[%c0, %c0_0] : memref<8x128xf32, #tpu.memory_space<vmem>>, vector<8x128xf32>
    %cst = arith.constant 1.000000e+00 : f32
    %1 = vector.broadcast %cst : f32 to vector<8x128xf32>
    %2 = arith.addf %0, %1 : vector<8x128xf32>
    %c0_1 = arith.constant 0 : index
    %c0_2 = arith.constant 0 : index
    %3 = vector.load %arg2[%c0_1, %c0_2] : memref<8x128xf32, #tpu.memory_space<vmem>>, vector<8x128xf32>
    tpu.vector_store %arg2[%c0_1, %c0_2], %2 {strides = array<i32>} : memref<8x128xf32, #tpu.memory_space<vmem>>, vector<8x128xf32>,
    return
  }
  func.func @transform_0(%arg0: i32) -> (i32, i32) {
    %c0_i32 = arith.constant 0 : i32
    %c0_i32_0 = arith.constant 0 : i32
    %c0_i32_1 = arith.constant 0 : i32
    return %c0_i32, %c0_i32_0 : i32, i32
  }
  func.func @transform_1(%arg0: i32) -> (i32, i32) {
    %c0_i32 = arith.constant 0 : i32
    %c0_i32_0 = arith.constant 0 : i32
    %c0_i32_1 = arith.constant 0 : i32
    return %c0_i32, %c0_i32_0 : i32, i32
  }
}

module attributes {stable_mosaic.version = 11 : i64} {
  func.func @_linear_kernel(%arg0: i32, %arg1: memref<12x32xf32, #tpu.memory_space<vmem>>, %arg2: memref<32x128xbf16, #tpu.memory_space<vmem>>, %arg3: memref<1x128xf32, #tpu.memory_space<vmem>>, %arg4: memref<12x128xf32, #tpu.memory_space<vmem>>) attributes {dimension_semantics = [#tpu.dimension_semantics<parallel>], iteration_bounds = array<i64: 1>, scalar_prefetch = 0 : i64, scratch_operands = 0 : i64, tpu.core_type = #tpu.core_type<tc>, window_params = [{transform_indices = @transform_0, window_bounds = array<i64: 12, 32>}, {pipeline_mode = #tpu.pipeline_mode<synchronous>, transform_indices = @transform_1, window_bounds = array<i64: 32, 128>}, {pipeline_mode = #tpu.pipeline_mode<synchronous>, transform_indices = @transform_2, window_bounds = array<i64: 1, 128>}, {transform_indices = @transform_3, window_bounds = array<i64: 12, 128>}]} {
    %c0 = arith.constant 0 : index
    %c0_0 = arith.constant 0 : index
    %0 = vector.load %arg1[%c0, %c0_0] : memref<12x32xf32, #tpu.memory_space<vmem>>, vector<12x32xf32>
    %1 = arith.truncf %0 : vector<12x32xf32> to vector<12x32xbf16>
    %c0_1 = arith.constant 0 : index
    %c0_2 = arith.constant 0 : index
    %2 = vector.load %arg2[%c0_1, %c0_2] : memref<32x128xbf16, #tpu.memory_space<vmem>>, vector<32x128xbf16>
    %cst = arith.constant dense<0.000000e+00> : vector<12x128xf32>
    %3 = tpu.matmul %1, %2, %cst {dimension_numbers = #tpu.dot_dimension_numbers<[1], [0], [0], [1], [0, 0, 1, 1], [], []>} : vector<12x32xbf16>, vector<32x128xbf16>, vector<12x128xf32> -> vector<12x128xf32>
    %c0_3 = arith.constant 0 : index
    %c0_4 = arith.constant 0 : index
    %4 = vector.load %arg3[%c0_3, %c0_4] : memref<1x128xf32, #tpu.memory_space<vmem>>, vector<1x128xf32>
    %5 = vector.broadcast %4 : vector<1x128xf32> to vector<12x128xf32>
    %6 = arith.addf %3, %5 : vector<12x128xf32>
    %c0_5 = arith.constant 0 : index
    %c0_6 = arith.constant 0 : index
    %7 = vector.load %arg4[%c0_5, %c0_6] : memref<12x128xf32, #tpu.memory_space<vmem>>, vector<12x128xf32>
    tpu.vector_store %arg4[%c0_5, %c0_6], %6 {strides = array<i32>} : memref<12x128xf32, #tpu.memory_space<vmem>>, vector<12x128xf32>,
    return
  }
  func.func @transform_0(%arg0: i32) -> (i32, i32) {
    %c0_i32 = arith.constant 0 : i32
    %c0_i32_0 = arith.constant 0 : i32
    return %arg0, %c0_i32 : i32, i32
  }
  func.func @transform_1(%arg0: i32) -> (i32, i32) {
    %c0_i32 = arith.constant 0 : i32
    %c0_i32_0 = arith.constant 0 : i32
    %c0_i32_1 = arith.constant 0 : i32
    return %c0_i32, %c0_i32_0 : i32, i32
  }
  func.func @transform_2(%arg0: i32) -> (i32, i32) {
    %c0_i32 = arith.constant 0 : i32
    %c0_i32_0 = arith.constant 0 : i32
    %c0_i32_1 = arith.constant 0 : i32
    return %c0_i32, %c0_i32_0 : i32, i32
  }
  func.func @transform_3(%arg0: i32) -> (i32, i32) {
    %c0_i32 = arith.constant 0 : i32
    %c0_i32_0 = arith.constant 0 : i32
    return %arg0, %c0_i32 : i32, i32
  }
}

</mosaic_0001>

<llo_original>
// kernel: tpu_custom_call.1
$region0: #{tpu_custom_call.1}
  #allocation0 [shape = 'u32[]', space=smem, size = 0x4, offset = 0x4, fixed_abs, tag = 'smem constant byte address 0x4 - core index']
  #allocation1 [shape = 'u32[144,128]{1,0:T(1,128)}', space=vmem, size = 0x12000, scoped, tag = 'internal scratch']
  %s0 = inlined_call_operand.hbm [shape: f32[8,128], index: 0, kind: input, shape index: {}]
  %s1 = inlined_call_operand.hbm [shape: f32[8,128], index: 1, kind: output, shape index: {}]
  %s2 = sld [smem:[#allocation0]]
  $region18: #{tpu_custom_call.1} parent=0
    _
  %s4 = ssub.s32 1, %s2
  %s5 = scalar_select 0, %s4, %s2
  $region1: #{tpu_custom_call.1} parent=0
    #allocation2 [shape = 'u8[4096]{0}', space=vmem, size = 0x1000, scoped, tag = 'input window, operand 0, single buffered']
    #allocation3 [shape = 's32[1]{0}', space=sflag, size = 0x4, scoped, tag = 'scoped memory for tpu_custom_call.1']
    #allocation4 [shape = 's32[1]{0}', space=sflag, size = 0x4, scoped, tag = 'scoped memory for tpu_custom_call.1']
    #allocation5 [shape = 'u8[4096]{0}', space=vmem, size = 0x1000, scoped, tag = 'output window, operand 0, single buffered']
    %6 = vsyncpa [#allocation3], 0
    %7 = vsyncpa [#allocation4], 0
    // Predicated region
    $region2: #{tpu_custom_call.1} parent=1 // pred_check
      _
    $region3: #{tpu_custom_call.1} parent=1 // pred_check_branch
      %9 = sbr.rel (0) target = $region5
    $region4: #{tpu_custom_call.1} parent=1 // pred_region
      %s11 = ssub.s32 128, 128
      %12 = vsyncadd [#allocation3], %s11
      %s14 = sshll.u32 [#allocation2], 4
      %s15 = int_to_ptr.vmem [resolvable:$true] %s14
      %17 = dma.hbm_to_vmem [thread:$0]  %s0, 128, %s15, [#allocation3]
    $region5: #{tpu_custom_call.1} parent=1 // pred_fallthru
      _
    // Predicated region
    $region6: #{tpu_custom_call.1} parent=1 // pred_check
      _
    $region7: #{tpu_custom_call.1} parent=1 // pred_check_branch
      %19 = sbr.rel (0) target = $region9
    $region8: #{tpu_custom_call.1} parent=1 // pred_region
      %20 = dma.done [#allocation3], 128
    $region9: #{tpu_custom_call.1} parent=1 // pred_fallthru
      _
    %v21 = vld [vmem:[#allocation2] sm:$0xff]
    %v22 = vadd.f32 %v21, 1.0
    %23 = vst [vmem:[#allocation5] sm:$0xff] %v22
    // Predicated region
    $region10: #{tpu_custom_call.1} parent=1 // pred_check
      _
    $region11: #{tpu_custom_call.1} parent=1 // pred_check_branch
      %25 = sbr.rel (0) target = $region13
    $region12: #{tpu_custom_call.1} parent=1 // pred_region
      %s27 = ssub.s32 128, 128
      %28 = vsyncadd [#allocation4], %s27
      %s30 = sshll.u32 [#allocation5], 4
      %s31 = int_to_ptr.vmem [resolvable:$true] %s30
      %33 = dma.vmem_to_hbm [thread:$0]  %s31, 128, %s1, [#allocation4]
    $region13: #{tpu_custom_call.1} parent=1 // pred_fallthru
      _
    // Predicated region
    $region14: #{tpu_custom_call.1} parent=1 // pred_check
      _
    $region15: #{tpu_custom_call.1} parent=1 // pred_check_branch
      %35 = sbr.rel (0) target = $region17
    $region16: #{tpu_custom_call.1} parent=1 // pred_region
      %36 = dma.done [#allocation4], 128
    $region17: #{tpu_custom_call.1} parent=1 // pred_fallthru
      _
    %37 = vsyncpa [#allocation3], 1
    %38 = vsyncpa [#allocation4], 1

// kernel: tpu_custom_call.1
$region0: #{tpu_custom_call.1}
  #allocation0 [shape = 'u32[]', space=smem, size = 0x4, offset = 0x4, fixed_abs, tag = 'smem constant byte address 0x4 - core index']
  #allocation1 [shape = 'u32[144,128]{1,0:T(1,128)}', space=vmem, size = 0x12000, scoped, tag = 'internal scratch']
  %s0 = inlined_call_operand.hbm [shape: f32[12,32], index: 0, kind: input, shape index: {}]
  %s1 = inlined_call_operand.hbm [shape: bf16[32,128], index: 1, kind: input, shape index: {}]
  %s2 = inlined_call_operand.vmem [shape: f32[1,128], index: 2, kind: input, shape index: {}]
  %s3 = inlined_call_operand.hbm [shape: f32[12,128], index: 3, kind: output, shape index: {}]
  %s4 = sld [smem:[#allocation0]]
  $region30: #{tpu_custom_call.1} parent=0
    _
  %s6 = ssub.s32 1, %s4
  %s7 = scalar_select 0, %s6, %s4
  $region1: #{tpu_custom_call.1} parent=0
    #allocation2 [shape = 'u8[8192]{0}', space=vmem, size = 0x2000, scoped, tag = 'input window, operand 0, single buffered']
    #allocation3 [shape = 's32[1]{0}', space=sflag, size = 0x4, scoped, tag = 'scoped memory for tpu_custom_call.1']
    #allocation4 [shape = 's32[1]{0}', space=sflag, size = 0x4, scoped, tag = 'scoped memory for tpu_custom_call.1']
    #allocation5 [shape = 'u8[8192]{0}', space=vmem, size = 0x2000, scoped, tag = 'input window, operand 1, single buffered']
    #allocation6 [shape = 's32[1]{0}', space=sflag, size = 0x4, scoped, tag = 'scoped memory for tpu_custom_call.1']
    #allocation7 [shape = 'u8[8192]{0}', space=vmem, size = 0x2000, scoped, tag = 'output window, operand 0, single buffered']
    %8 = vsyncpa [#allocation3], 0
    %9 = vsyncpa [#allocation6], 0
    %10 = vsyncpa [#allocation4], 0
    // Predicated region
    $region2: #{tpu_custom_call.1} parent=1 // pred_check
      _
    $region3: #{tpu_custom_call.1} parent=1 // pred_check_branch
      %12 = sbr.rel (0) target = $region5
    $region4: #{tpu_custom_call.1} parent=1 // pred_region
      %s14 = ssub.s32 256, 256
      %15 = vsyncadd [#allocation3], %s14
      %s16 = sshll.u32 [#allocation2], 4
      %s17 = int_to_ptr.vmem [resolvable:$true] %s16
      %22 = dma.hbm_to_vmem [thread:$0]  %s0, 256, %s17, [#allocation3], 128, 128, 8
    $region5: #{tpu_custom_call.1} parent=1 // pred_fallthru
      _
    // Predicated region
    $region6: #{tpu_custom_call.1} parent=1 // pred_check
      _
    $region7: #{tpu_custom_call.1} parent=1 // pred_check_branch
      %24 = sbr.rel (0) target = $region9
    $region8: #{tpu_custom_call.1} parent=1 // pred_region
      %s26 = ssub.s32 256, 256
      %27 = vsyncadd [#allocation6], %s26
      %s28 = sshll.u32 [#allocation5], 4
      %s29 = int_to_ptr.vmem [resolvable:$true] %s28
      %34 = dma.hbm_to_vmem [thread:$0]  %s1, 256, %s29, [#allocation6], 64, 64, 4
    $region9: #{tpu_custom_call.1} parent=1 // pred_fallthru
      _
    // Predicated region
    $region10: #{tpu_custom_call.1} parent=1 // pred_check
      _
    $region11: #{tpu_custom_call.1} parent=1 // pred_check_branch
      %36 = sbr.rel (0) target = $region13
    $region12: #{tpu_custom_call.1} parent=1 // pred_region
      _
    $region13: #{tpu_custom_call.1} parent=1 // pred_fallthru
      _
    // Predicated region
    $region14: #{tpu_custom_call.1} parent=1 // pred_check
      _
    $region15: #{tpu_custom_call.1} parent=1 // pred_check_branch
      %38 = sbr.rel (0) target = $region17
    $region16: #{tpu_custom_call.1} parent=1 // pred_region
      %39 = dma.done [#allocation3], 256
    $region17: #{tpu_custom_call.1} parent=1 // pred_fallthru
      _
    // Predicated region
    $region18: #{tpu_custom_call.1} parent=1 // pred_check
      _
    $region19: #{tpu_custom_call.1} parent=1 // pred_check_branch
      %41 = sbr.rel (0) target = $region21
    $region20: #{tpu_custom_call.1} parent=1 // pred_region
      %42 = dma.done [#allocation6], 256
    $region21: #{tpu_custom_call.1} parent=1 // pred_fallthru
      _
    %v44 = vld [vmem:[#allocation2] sm:$0xff]
    %v45 = vld [vmem:[#allocation2 + $0x8] sm:$0xf]
    %v46 = vpack.c.bf16 %v45, %v44
    %v47 = vld [vmem:[#allocation5] sm:$0xf]
    %v48 = vld [vmem:[#allocation5 + $0x4] sm:$0xf]
    %v49 = vld [vmem:[#allocation5 + $0x8] sm:$0xf]
    %v50 = vld [vmem:[#allocation5 + $0xc] sm:$0xf]
    %v51 = vld [vmem:[%s2] sm:$0x1]
    %v53 = vlaneseq
    %v54 = vshrl.u32 %v53, 7
    %v55 = vsub.s32 0, %v54
    %v56 = vrot.slane %v51, %v55
    %v62 = vunpack.c.l.b16 %v47
    %v63 = vunpack.c.l.b16 %v48
    %v64 = vunpack.c.l.b16 %v49
    %v65 = vunpack.c.l.b16 %v50
    %v66 = vpack.c.b16 %v63, %v62
    %v67 = vpack.c.b16 %v65, %v64
    %vm70 = vcmask 261120
    %v72 = vsel %vm70, %v46, 0
    %74 = vmatprep.subr.bf16.mxu0 0
    %75 = vmatpush1.bf16.msra.mxu0 0
    %76 = vmatprep.subr.bf16.mxu0 0
    %77 = vmatpush1.bf16.msra.mxu0 0
    %78 = vmatprep.subr.bf16.mxu0 0
    %79 = vmatpush1.bf16.msra.mxu0 0
    %80 = vmatprep.subr.bf16.mxu0 0
    %81 = vmatpush1.bf16.msra.mxu0 0
    %82 = vmatprep.subr.bf16.mxu0 0
    %83 = vmatpush1.bf16.msra.mxu0 0
    %84 = vmatprep.subr.bf16.mxu0 0
    %85 = vmatpush1.bf16.msra.mxu0 0
    %86 = vmatprep.subr.bf16.mxu0 0
    %87 = vmatpush1.bf16.msra.mxu0 %v67
    %88 = vmatprep.subr.bf16.mxu0 0
    %89 = vmatpush1.bf16.msra.mxu0 %v66
    %90 = vmatprep.subr.bf16.mxu0 0
    %91 = vmatpush2.bf16.msra.mxu0 0
    %92 = vmatprep.subr.bf16.mxu0 0
    %93 = vmatpush2.bf16.msra.mxu0 0
    %94 = vmatprep.subr.bf16.mxu0 0
    %95 = vmatpush2.bf16.msra.mxu0 0
    %96 = vmatprep.subr.bf16.mxu0 0
    %97 = vmatpush2.bf16.msra.mxu0 0
    %98 = vmatprep.subr.bf16.mxu0 0
    %99 = vmatpush2.bf16.msra.mxu0 0
    %100 = vmatprep.subr.bf16.mxu0 0
    %101 = vmatpush2.bf16.msra.mxu0 0
    %102 = vmatprep.subr.bf16.mxu0 0
    %103 = vmatpush2.bf16.msra.mxu0 0
    %104 = vmatprep.subr.bf16.mxu0 0
    %105 = vmatpush2.bf16.msra.mxu0 0
    %106 = vmatprep.mubr.bf16.mxu0 0
    %107 = vmatmul.mubr.bf16.gmra.mxu0 %v72
    %v108 = vpop.f32.mrf.mxu0
    %v109 = vadd.f32 %v56, %v108
    %v110 = vpop.f32.mrf.mxu0
    %v111 = vpop.f32.mrf.mxu0
    %v112 = vadd.f32 %v56, %v111
    %v113 = vpop.f32.mrf.mxu0
    %114 = vdwg.mxu0
    %115 = vst [vmem:[#allocation7] sm:$0xff] %v109
    %116 = vst [vmem:[#allocation7 + $0x8] sm:$0xf] %v112
    // Predicated region
    $region22: #{tpu_custom_call.1} parent=1 // pred_check
      _
    $region23: #{tpu_custom_call.1} parent=1 // pred_check_branch
      %118 = sbr.rel (0) target = $region25
    $region24: #{tpu_custom_call.1} parent=1 // pred_region
      %s120 = ssub.s32 256, 256
      %121 = vsyncadd [#allocation4], %s120
      %s122 = sshll.u32 [#allocation7], 4
      %s123 = int_to_ptr.vmem [resolvable:$true] %s122
      %128 = dma.vmem_to_hbm [thread:$0]  %s123, 256, %s3, [#allocation4], 128, 128, 8
    $region25: #{tpu_custom_call.1} parent=1 // pred_fallthru
      _
    // Predicated region
    $region26: #{tpu_custom_call.1} parent=1 // pred_check
      _
    $region27: #{tpu_custom_call.1} parent=1 // pred_check_branch
      %130 = sbr.rel (0) target = $region29
    $region28: #{tpu_custom_call.1} parent=1 // pred_region
      %131 = dma.done [#allocation4], 256
    $region29: #{tpu_custom_call.1} parent=1 // pred_fallthru
      _
    %132 = vsyncpa [#allocation3], 1
    %133 = vsyncpa [#allocation6], 1
    %134 = vsyncpa [#allocation4], 1

</llo_original>
